<compile_context>
chip_gen: v5e
topology: v5e:2x2
jax: 0.10.0
libtpu: 0.0.40
codegen_flags: <defaults>
</compile_context>

<pallas_src>
import functools

import jax
import jax.numpy as jnp
from jax import lax
from jax.experimental import pallas as pl
from jax.experimental.pallas import tpu as pltpu


def _dsconv_kernel(x_ref, w_ref, consts_ref, o_ref, *, W, K, Cout, nb):
    """Fused depthwise-separable conv block, channels-on-sublanes / HW-on-lanes.

    x_ref:      (nb, Cin, H*W)    input block (NCHW with HW flattened onto lanes)
    w_ref:      (K*K*Cout, Cin)   combined dw+pw weight; row t*Cout + o, column c holds
                                  sum_q Wpw[o, c*kpl+q] * Wdw[c*kpl+q, tap t]
    consts_ref: (Cout, 3)         [:,0] folded bias, [:,1] BN scale, [:,2] BN shift
    o_ref:      (nb, Cout, H*W)   output; only flattened positions i*W + j with i < Ho, j < Wo
                                  are valid VALID-conv outputs (the wrapper slices them out)
    """
    HW = x_ref.shape[-1]
    KK = K * K

    # Loop-invariant loads, hoisted out of the batch loop.
    w = w_ref[...]                   # (KK*Cout, Cin)
    bias = consts_ref[:, 0:1]        # (Cout, 1)
    scale = consts_ref[:, 1:2]       # (Cout, 1)
    shift = consts_ref[:, 2:3]       # (Cout, 1)

    for n in range(nb):              # static unroll over the (small) batch block
        x = x_ref[n]                 # (Cin, HW), lane-dense f32

        # One MXU matmul produces every tap's channel contraction at once:
        #   y[t*Cout + o, p] = sum_c W_comb[t, o, c] * x[c, p]
        y = jnp.dot(w, x, preferred_element_type=jnp.float32)     # (KK*Cout, HW)

        # Accumulate taps: tap (ki, kj) is a lane rotation by ki*W + kj of its slab.
        # Wrapped lanes only affect invalid output positions (discarded by the wrapper).
        acc = y[0:Cout, :]                                        # tap (0, 0): no shift
        for t in range(1, KK):
            ki, kj = divmod(t, K)
            s = ki * W + kj
            slab = y[t * Cout:(t + 1) * Cout, :]                  # (Cout, HW), 8-aligned slice
            acc = acc + pltpu.roll(slab, HW - s, axis=1)          # rolled[:, p] = slab[:, p+s]

        # bias -> ReLU -> folded BatchNorm.  Dropout is identity in eval mode.
        # TODO(synk): training-mode dropout (random mask * 1/(1-p)) and BN batch statistics.
        z = jnp.maximum(acc + bias, 0.0)
        o_ref[n] = z * scale + shift


def dsconv_block(x_nchw, params, *, eps=1e-5, batch_block=None):
    """Forward pass of DepthwiseSeparableConv2dBlock (padding=0, stride=1, eval mode)."""
    wdw, bdw, wpw, bpw, gamma, beta, rmean, rvar = params
    N, Cin, H, W = x_nchw.shape
    Cmid = wdw.shape[0]                       # in_channels * kernels_per_layer
    kpl = Cmid // Cin
    K = wdw.shape[-1]
    Cout = wpw.shape[0]
    Ho, Wo = H - K + 1, W - K + 1
    HW = H * W

    nb = N if batch_block is None else batch_block
    assert N % nb == 0

    # Free reshape: channels on sublanes, flattened spatial on lanes (no transpose, no repeat).
    x_k = x_nchw.reshape(N, Cin, HW).astype(jnp.float32)

    # Fuse depthwise + pointwise into one (K*K*Cout, Cin) weight.
    # PyTorch grouped-conv ordering: mid channel m = c*kpl + q reads input channel c.
    wpw_mat = wpw[:, :, 0, 0].astype(jnp.float32)                       # (Cout, Cmid)
    wpw_ocq = wpw_mat.reshape(Cout, Cin, kpl)                           # [o, c, q]
    wdw_cqt = wdw.astype(jnp.float32).reshape(Cin, kpl, K * K)          # [c, q, t]
    w_comb = jnp.einsum('ocq,cqt->toc', wpw_ocq, wdw_cqt)               # (K*K, Cout, Cin)
    w_k = w_comb.reshape(K * K * Cout, Cin)

    # Fold depthwise bias into the pointwise bias; fold BatchNorm (eval) into scale/shift.
    bias_fold = bpw.astype(jnp.float32) + wpw_mat @ bdw.astype(jnp.float32)
    scale = gamma / jnp.sqrt(rvar + eps)
    shift = beta - rmean * scale
    consts = jnp.stack([bias_fold, scale, shift], axis=1).astype(jnp.float32)   # (Cout, 3)

    out_flat = pl.pallas_call(
        functools.partial(_dsconv_kernel, W=W, K=K, Cout=Cout, nb=nb),
        out_shape=jax.ShapeDtypeStruct((N, Cout, HW), jnp.float32),
        grid_spec=pltpu.PrefetchScalarGridSpec(
            num_scalar_prefetch=0,
            grid=(N // nb,),
            in_specs=[
                pl.BlockSpec((nb, Cin, HW), lambda i: (i, 0, 0)),
                pl.BlockSpec((K * K * Cout, Cin), lambda i: (0, 0)),
                pl.BlockSpec((Cout, 3), lambda i: (0, 0)),
            ],
            out_specs=pl.BlockSpec((nb, Cout, HW), lambda i: (i, 0, 0)),
        ),
        compiler_params=pltpu.CompilerParams(dimension_semantics=("parallel",)),
    )(x_k, w_k, consts)

    # Only flattened positions i*W + j with i < Ho, j < Wo are valid VALID-conv outputs.
    return out_flat.reshape(N, Cout, H, W)[:, :, :Ho, :Wo]


def reference(x_nchw, params, *, eps=1e-5):
    """Pure-JAX reference mirroring the PyTorch forward (eval mode)."""
    wdw, bdw, wpw, bpw, gamma, beta, rmean, rvar = params
    Cin = x_nchw.shape[1]
    dn = ("NCHW", "OIHW", "NCHW")
    dw = lax.conv_general_dilated(x_nchw, wdw, (1, 1), "VALID",
                                  dimension_numbers=dn, feature_group_count=Cin)
    dw = dw + bdw[None, :, None, None]
    pw = lax.conv_general_dilated(dw, wpw, (1, 1), "VALID", dimension_numbers=dn)
    pw = pw + bpw[None, :, None, None]
    r = jnp.maximum(pw, 0.0)
    bn = (r - rmean[None, :, None, None]) / jnp.sqrt(rvar[None, :, None, None] + eps)
    bn = bn * gamma[None, :, None, None] + beta[None, :, None, None]
    return bn  # dropout == identity in eval mode


if __name__ == "__main__":
    # Module hyperparameters (defaults of DepthwiseSeparableConv2dBlock).
    N, Cin, H, W = 2, 4, 16, 16
    kernels_per_layer = 1
    Cout = 8
    K = 3
    Cmid = Cin * kernels_per_layer

    key = jax.random.PRNGKey(0)
    kx, k1, k2, k3, k4, k5, k6, k7, k8 = jax.random.split(key, 9)

    x = jax.random.normal(kx, (N, Cin, H, W), jnp.float32)

    # Deterministic synthetic parameters matching PyTorch shapes.
    w_dw = jax.random.normal(k1, (Cmid, 1, K, K), jnp.float32) * 0.2     # depthwise weight
    b_dw = jax.random.normal(k2, (Cmid,), jnp.float32) * 0.1             # depthwise bias
    w_pw = jax.random.normal(k3, (Cout, Cmid, 1, 1), jnp.float32) * 0.2  # pointwise weight
    b_pw = jax.random.normal(k4, (Cout,), jnp.float32) * 0.1             # pointwise bias
    gamma = 1.0 + 0.1 * jax.random.normal(k5, (Cout,), jnp.float32)      # BN weight
    beta = 0.1 * jax.random.normal(k6, (Cout,), jnp.float32)             # BN bias
    rmean = 0.1 * jax.random.normal(k7, (Cout,), jnp.float32)            # BN running_mean
    rvar = 0.5 + jnp.abs(jax.random.normal(k8, (Cout,), jnp.float32))    # BN running_var

    params = (w_dw, b_dw, w_pw, b_pw, gamma, beta, rmean, rvar)

    out = jax.block_until_ready(dsconv_block(x, params))
    ref = jax.block_until_ready(reference(x, params))

    assert out.shape == (N, Cout, H - K + 1, W - K + 1), out.shape
    assert jnp.allclose(out, ref, atol=1e-4, rtol=1e-4), float(jnp.max(jnp.abs(out - ref)))

    print("KERNEL_OK")
</pallas_src>

<mosaic_0001>
module attributes {stable_mosaic.version = 11 : i64} {
  func.func @_dsconv_kernel(%arg0: i32, %arg1: memref<2x4x256xf32, #tpu.memory_space<vmem>>, %arg2: memref<72x4xf32, #tpu.memory_space<vmem>>, %arg3: memref<8x3xf32, #tpu.memory_space<vmem>>, %arg4: memref<2x8x256xf32, #tpu.memory_space<vmem>>) attributes {dimension_semantics = [#tpu.dimension_semantics<parallel>], iteration_bounds = array<i64: 1>, scalar_prefetch = 0 : i64, scratch_operands = 0 : i64, tpu.core_type = #tpu.core_type<tc>, window_params = [{transform_indices = @transform_0, window_bounds = array<i64: 2, 4, 256>}, {pipeline_mode = #tpu.pipeline_mode<synchronous>, transform_indices = @transform_1, window_bounds = array<i64: 72, 4>}, {pipeline_mode = #tpu.pipeline_mode<synchronous>, transform_indices = @transform_2, window_bounds = array<i64: 8, 3>}, {transform_indices = @transform_3, window_bounds = array<i64: 2, 8, 256>}]} {
    %c0 = arith.constant 0 : index
    %c0_0 = arith.constant 0 : index
    %0 = vector.load %arg2[%c0, %c0_0] : memref<72x4xf32, #tpu.memory_space<vmem>>, vector<72x4xf32>
    %c0_1 = arith.constant 0 : index
    %c0_2 = arith.constant 0 : index
    %1 = vector.load %arg3[%c0_1, %c0_2] : memref<8x3xf32, #tpu.memory_space<vmem>>, vector<8x1xf32>
    %c0_3 = arith.constant 0 : index
    %c1 = arith.constant 1 : index
    %2 = vector.load %arg3[%c0_3, %c1] : memref<8x3xf32, #tpu.memory_space<vmem>>, vector<8x1xf32>
    %c0_4 = arith.constant 0 : index
    %c2 = arith.constant 2 : index
    %3 = vector.load %arg3[%c0_4, %c2] : memref<8x3xf32, #tpu.memory_space<vmem>>, vector<8x1xf32>
    %c0_5 = arith.constant 0 : index
    %c0_6 = arith.constant 0 : index
    %c0_7 = arith.constant 0 : index
    %4 = vector.load %arg1[%c0_5, %c0_6, %c0_7] : memref<2x4x256xf32, #tpu.memory_space<vmem>>, vector<1x4x256xf32>
    %5 = vector.shape_cast %4 : vector<1x4x256xf32> to vector<4x256xf32>
    %cst = arith.constant dense<0.000000e+00> : vector<72x256xf32>
    %6 = tpu.matmul %0, %5, %cst {dimension_numbers = #tpu.dot_dimension_numbers<[1], [0], [0], [1], [0, 0, 1, 1], [], []>} : vector<72x4xf32>, vector<4x256xf32>, vector<72x256xf32> -> vector<72x256xf32>
    %7 = vector.extract_strided_slice %6 {offsets = [0, 0], sizes = [8, 256], strides = [1, 1]} : vector<72x256xf32> to vector<8x256xf32>
    %8 = vector.extract_strided_slice %6 {offsets = [8, 0], sizes = [8, 256], strides = [1, 1]} : vector<72x256xf32> to vector<8x256xf32>
    %c255_i32 = arith.constant 255 : i32
    %9 = tpu.dynamic_rotate %8 by %c255_i32 dim 1 : vector<8x256xf32>, i32 -> vector<8x256xf32>
    %10 = arith.addf %7, %9 : vector<8x256xf32>
    %11 = vector.extract_strided_slice %6 {offsets = [16, 0], sizes = [8, 256], strides = [1, 1]} : vector<72x256xf32> to vector<8x256xf32>
    %c254_i32 = arith.constant 254 : i32
    %12 = tpu.dynamic_rotate %11 by %c254_i32 dim 1 : vector<8x256xf32>, i32 -> vector<8x256xf32>
    %13 = arith.addf %10, %12 : vector<8x256xf32>
    %14 = vector.extract_strided_slice %6 {offsets = [24, 0], sizes = [8, 256], strides = [1, 1]} : vector<72x256xf32> to vector<8x256xf32>
    %c240_i32 = arith.constant 240 : i32
    %15 = tpu.dynamic_rotate %14 by %c240_i32 dim 1 : vector<8x256xf32>, i32 -> vector<8x256xf32>
    %16 = arith.addf %13, %15 : vector<8x256xf32>
    %17 = vector.extract_strided_slice %6 {offsets = [32, 0], sizes = [8, 256], strides = [1, 1]} : vector<72x256xf32> to vector<8x256xf32>
    %c239_i32 = arith.constant 239 : i32
    %18 = tpu.dynamic_rotate %17 by %c239_i32 dim 1 : vector<8x256xf32>, i32 -> vector<8x256xf32>
    %19 = arith.addf %16, %18 : vector<8x256xf32>
    %20 = vector.extract_strided_slice %6 {offsets = [40, 0], sizes = [8, 256], strides = [1, 1]} : vector<72x256xf32> to vector<8x256xf32>
    %c238_i32 = arith.constant 238 : i32
    %21 = tpu.dynamic_rotate %20 by %c238_i32 dim 1 : vector<8x256xf32>, i32 -> vector<8x256xf32>
    %22 = arith.addf %19, %21 : vector<8x256xf32>
    %23 = vector.extract_strided_slice %6 {offsets = [48, 0], sizes = [8, 256], strides = [1, 1]} : vector<72x256xf32> to vector<8x256xf32>
    %c224_i32 = arith.constant 224 : i32
    %24 = tpu.dynamic_rotate %23 by %c224_i32 dim 1 : vector<8x256xf32>, i32 -> vector<8x256xf32>
    %25 = arith.addf %22, %24 : vector<8x256xf32>
    %26 = vector.extract_strided_slice %6 {offsets = [56, 0], sizes = [8, 256], strides = [1, 1]} : vector<72x256xf32> to vector<8x256xf32>
    %c223_i32 = arith.constant 223 : i32
    %27 = tpu.dynamic_rotate %26 by %c223_i32 dim 1 : vector<8x256xf32>, i32 -> vector<8x256xf32>
    %28 = arith.addf %25, %27 : vector<8x256xf32>
    %29 = vector.extract_strided_slice %6 {offsets = [64, 0], sizes = [8, 256], strides = [1, 1]} : vector<72x256xf32> to vector<8x256xf32>
    %c222_i32 = arith.constant 222 : i32
    %30 = tpu.dynamic_rotate %29 by %c222_i32 dim 1 : vector<8x256xf32>, i32 -> vector<8x256xf32>
    %31 = arith.addf %28, %30 : vector<8x256xf32>
    %32 = vector.broadcast %1 : vector<8x1xf32> to vector<8x256xf32>
    %33 = arith.addf %31, %32 : vector<8x256xf32>
    %cst_8 = arith.constant 0.000000e+00 : f32
    %34 = vector.broadcast %cst_8 : f32 to vector<8x256xf32>
    %35 = arith.maximumf %33, %34 : vector<8x256xf32>
    %36 = vector.broadcast %2 : vector<8x1xf32> to vector<8x256xf32>
    %37 = arith.mulf %35, %36 : vector<8x256xf32>
    %38 = vector.broadcast %3 : vector<8x1xf32> to vector<8x256xf32>
    %39 = arith.addf %37, %38 : vector<8x256xf32>
    %c0_9 = arith.constant 0 : index
    %c0_10 = arith.constant 0 : index
    %c0_11 = arith.constant 0 : index
    %40 = vector.load %arg4[%c0_9, %c0_10, %c0_11] : memref<2x8x256xf32, #tpu.memory_space<vmem>>, vector<1x8x256xf32>
    %41 = vector.shape_cast %40 : vector<1x8x256xf32> to vector<8x256xf32>
    %42 = vector.shape_cast %39 : vector<8x256xf32> to vector<1x8x256xf32>
    tpu.vector_store %arg4[%c0_9, %c0_10, %c0_11], %42 {strides = array<i32>} : memref<2x8x256xf32, #tpu.memory_space<vmem>>, vector<1x8x256xf32>,
    %c1_12 = arith.constant 1 : index
    %c0_13 = arith.constant 0 : index
    %c0_14 = arith.constant 0 : index
    %43 = vector.load %arg1[%c1_12, %c0_13, %c0_14] : memref<2x4x256xf32, #tpu.memory_space<vmem>>, vector<1x4x256xf32>
    %44 = vector.shape_cast %43 : vector<1x4x256xf32> to vector<4x256xf32>
    %cst_15 = arith.constant dense<0.000000e+00> : vector<72x256xf32>
    %45 = tpu.matmul %0, %44, %cst_15 {dimension_numbers = #tpu.dot_dimension_numbers<[1], [0], [0], [1], [0, 0, 1, 1], [], []>} : vector<72x4xf32>, vector<4x256xf32>, vector<72x256xf32> -> vector<72x256xf32>
    %46 = vector.extract_strided_slice %45 {offsets = [0, 0], sizes = [8, 256], strides = [1, 1]} : vector<72x256xf32> to vector<8x256xf32>
    %47 = vector.extract_strided_slice %45 {offsets = [8, 0], sizes = [8, 256], strides = [1, 1]} : vector<72x256xf32> to vector<8x256xf32>
    %c255_i32_16 = arith.constant 255 : i32
    %48 = tpu.dynamic_rotate %47 by %c255_i32_16 dim 1 : vector<8x256xf32>, i32 -> vector<8x256xf32>
    %49 = arith.addf %46, %48 : vector<8x256xf32>
    %50 = vector.extract_strided_slice %45 {offsets = [16, 0], sizes = [8, 256], strides = [1, 1]} : vector<72x256xf32> to vector<8x256xf32>
    %c254_i32_17 = arith.constant 254 : i32
    %51 = tpu.dynamic_rotate %50 by %c254_i32_17 dim 1 : vector<8x256xf32>, i32 -> vector<8x256xf32>
    %52 = arith.addf %49, %51 : vector<8x256xf32>
    %53 = vector.extract_strided_slice %45 {offsets = [24, 0], sizes = [8, 256], strides = [1, 1]} : vector<72x256xf32> to vector<8x256xf32>
    %c240_i32_18 = arith.constant 240 : i32
    %54 = tpu.dynamic_rotate %53 by %c240_i32_18 dim 1 : vector<8x256xf32>, i32 -> vector<8x256xf32>
    %55 = arith.addf %52, %54 : vector<8x256xf32>
    %56 = vector.extract_strided_slice %45 {offsets = [32, 0], sizes = [8, 256], strides = [1, 1]} : vector<72x256xf32> to vector<8x256xf32>
    %c239_i32_19 = arith.constant 239 : i32
    %57 = tpu.dynamic_rotate %56 by %c239_i32_19 dim 1 : vector<8x256xf32>, i32 -> vector<8x256xf32>
    %58 = arith.addf %55, %57 : vector<8x256xf32>
    %59 = vector.extract_strided_slice %45 {offsets = [40, 0], sizes = [8, 256], strides = [1, 1]} : vector<72x256xf32> to vector<8x256xf32>
    %c238_i32_20 = arith.constant 238 : i32
    %60 = tpu.dynamic_rotate %59 by %c238_i32_20 dim 1 : vector<8x256xf32>, i32 -> vector<8x256xf32>
    %61 = arith.addf %58, %60 : vector<8x256xf32>
    %62 = vector.extract_strided_slice %45 {offsets = [48, 0], sizes = [8, 256], strides = [1, 1]} : vector<72x256xf32> to vector<8x256xf32>
    %c224_i32_21 = arith.constant 224 : i32
    %63 = tpu.dynamic_rotate %62 by %c224_i32_21 dim 1 : vector<8x256xf32>, i32 -> vector<8x256xf32>
    %64 = arith.addf %61, %63 : vector<8x256xf32>
    %65 = vector.extract_strided_slice %45 {offsets = [56, 0], sizes = [8, 256], strides = [1, 1]} : vector<72x256xf32> to vector<8x256xf32>
    %c223_i32_22 = arith.constant 223 : i32
    %66 = tpu.dynamic_rotate %65 by %c223_i32_22 dim 1 : vector<8x256xf32>, i32 -> vector<8x256xf32>
    %67 = arith.addf %64, %66 : vector<8x256xf32>
    %68 = vector.extract_strided_slice %45 {offsets = [64, 0], sizes = [8, 256], strides = [1, 1]} : vector<72x256xf32> to vector<8x256xf32>
    %c222_i32_23 = arith.constant 222 : i32
    %69 = tpu.dynamic_rotate %68 by %c222_i32_23 dim 1 : vector<8x256xf32>, i32 -> vector<8x256xf32>
    %70 = arith.addf %67, %69 : vector<8x256xf32>
    %71 = vector.broadcast %1 : vector<8x1xf32> to vector<8x256xf32>
    %72 = arith.addf %70, %71 : vector<8x256xf32>
    %cst_24 = arith.constant 0.000000e+00 : f32
    %73 = vector.broadcast %cst_24 : f32 to vector<8x256xf32>
    %74 = arith.maximumf %72, %73 : vector<8x256xf32>
    %75 = vector.broadcast %2 : vector<8x1xf32> to vector<8x256xf32>
    %76 = arith.mulf %74, %75 : vector<8x256xf32>
    %77 = vector.broadcast %3 : vector<8x1xf32> to vector<8x256xf32>
    %78 = arith.addf %76, %77 : vector<8x256xf32>
    %c1_25 = arith.constant 1 : index
    %c0_26 = arith.constant 0 : index
    %c0_27 = arith.constant 0 : index
    %79 = vector.load %arg4[%c1_25, %c0_26, %c0_27] : memref<2x8x256xf32, #tpu.memory_space<vmem>>, vector<1x8x256xf32>
    %80 = vector.shape_cast %79 : vector<1x8x256xf32> to vector<8x256xf32>
    %81 = vector.shape_cast %78 : vector<8x256xf32> to vector<1x8x256xf32>
    tpu.vector_store %arg4[%c1_25, %c0_26, %c0_27], %81 {strides = array<i32>} : memref<2x8x256xf32, #tpu.memory_space<vmem>>, vector<1x8x256xf32>,
    return
  }
  func.func @transform_0(%arg0: i32) -> (i32, i32, i32) {
    %c0_i32 = arith.constant 0 : i32
    %c0_i32_0 = arith.constant 0 : i32
    %c0_i32_1 = arith.constant 0 : i32
    return %arg0, %c0_i32, %c0_i32_0 : i32, i32, i32
  }
  func.func @transform_1(%arg0: i32) -> (i32, i32) {
    %c0_i32 = arith.constant 0 : i32
    %c0_i32_0 = arith.constant 0 : i32
    %c0_i32_1 = arith.constant 0 : i32
    return %c0_i32, %c0_i32_0 : i32, i32
  }
  func.func @transform_2(%arg0: i32) -> (i32, i32) {
    %c0_i32 = arith.constant 0 : i32
    %c0_i32_0 = arith.constant 0 : i32
    %c0_i32_1 = arith.constant 0 : i32
    return %c0_i32, %c0_i32_0 : i32, i32
  }
  func.func @transform_3(%arg0: i32) -> (i32, i32, i32) {
    %c0_i32 = arith.constant 0 : i32
    %c0_i32_0 = arith.constant 0 : i32
    %c0_i32_1 = arith.constant 0 : i32
    return %arg0, %c0_i32, %c0_i32_0 : i32, i32, i32
  }
}

</mosaic_0001>

<llo_original>
// kernel: tpu_custom_call.1
$region0: #{tpu_custom_call.1}
  #allocation0 [shape = 'u32[]', space=smem, size = 0x4, offset = 0x4, fixed_abs, tag = 'smem constant byte address 0x4 - core index']
  #allocation1 [shape = 'u32[72,128]{1,0:T(1,128)}', space=vmem, size = 0x9000, scoped, tag = 'internal scratch']
  %s0 = inlined_call_operand.vmem [shape: f32[2,4,256], index: 0, kind: input, shape index: {}]
  %s1 = inlined_call_operand.vmem [shape: f32[72,4], index: 1, kind: input, shape index: {}]
  %s2 = inlined_call_operand.vmem [shape: f32[8,3], index: 2, kind: input, shape index: {}]
  %s3 = inlined_call_operand.hbm [shape: f32[2,8,256], index: 3, kind: output, shape index: {}]
  %s4 = sld [smem:[#allocation0]]
  $region22: #{tpu_custom_call.1} parent=0
    _
  %s6 = ssub.s32 1, %s4
  %s7 = scalar_select 0, %s6, %s4
  $region1: #{tpu_custom_call.1} parent=0
    #allocation2 [shape = 'u8[16384]{0}', space=vmem, size = 0x4000, scoped, tag = 'output window, operand 0, single buffered']
    #allocation3 [shape = 's32[1]{0}', space=sflag, size = 0x4, scoped, tag = 'scoped memory for tpu_custom_call.1']
    %8 = vsyncpa [#allocation3], 0
    // Predicated region
    $region2: #{tpu_custom_call.1} parent=1 // pred_check
      _
    $region3: #{tpu_custom_call.1} parent=1 // pred_check_branch
      %10 = sbr.rel (0) target = $region5
    $region4: #{tpu_custom_call.1} parent=1 // pred_region
      _
    $region5: #{tpu_custom_call.1} parent=1 // pred_fallthru
      _
    // Predicated region
    $region6: #{tpu_custom_call.1} parent=1 // pred_check
      _
    $region7: #{tpu_custom_call.1} parent=1 // pred_check_branch
      %12 = sbr.rel (0) target = $region9
    $region8: #{tpu_custom_call.1} parent=1 // pred_region
      _
    $region9: #{tpu_custom_call.1} parent=1 // pred_fallthru
      _
    // Predicated region
    $region10: #{tpu_custom_call.1} parent=1 // pred_check
      _
    $region11: #{tpu_custom_call.1} parent=1 // pred_check_branch
      %14 = sbr.rel (0) target = $region13
    $region12: #{tpu_custom_call.1} parent=1 // pred_region
      _
    $region13: #{tpu_custom_call.1} parent=1 // pred_fallthru
      _
    %v15 = vld [vmem:[%s1] sm:$0xff]
    %v16 = vld [vmem:[%s1 + $0x8] sm:$0xff]
    %v17 = vld [vmem:[%s1 + $0x10] sm:$0xff]
    %v18 = vld [vmem:[%s1 + $0x18] sm:$0xff]
    %v19 = vld [vmem:[%s1 + $0x20] sm:$0xff]
    %v20 = vld [vmem:[%s1 + $0x28] sm:$0xff]
    %v21 = vld [vmem:[%s1 + $0x30] sm:$0xff]
    %v22 = vld [vmem:[%s1 + $0x38] sm:$0xff]
    %v23 = vld [vmem:[%s1 + $0x40] sm:$0xff]
    %v24 = vld [vmem:[%s2] sm:$0xff]
    %v25 = vld [vmem:[%s0] sm:$0xff]
    %27 = vst [vmem:[#allocation1] ss:$2 sm:$0xff] %v25
    %v28 = vld.sshfl [vmem:[#allocation1] sm:$0xff pattern:$0x75316420]
    %v29 = vld.sshfl [vmem:[#allocation1 + $0x8] sm:$0xff pattern:$0x75316420]
    %vm30 = vcmask 31744
    %v32 = vsel %vm30, %v15, 0
    %v35 = vsel %vm30, %v16, 0
    %v38 = vsel %vm30, %v17, 0
    %v41 = vsel %vm30, %v18, 0
    %v44 = vsel %vm30, %v19, 0
    %v47 = vsel %vm30, %v20, 0
    %v50 = vsel %vm30, %v21, 0
    %v53 = vsel %vm30, %v22, 0
    %v56 = vsel %vm30, %v23, 0
    %vm58 = vcmask 1043456
    %v59 = vsel %vm58, %v28, 0
    %v61 = vsel %vm58, %v29, 0
    %63 = vmatpush.msra.mxu0 0.0
    %64 = vmatpush.msra.mxu0 0.0
    %65 = vmatpush.msra.mxu0 0.0
    %66 = vmatpush.msra.mxu0 0.0
    %67 = vmatpush.msra.mxu0 0.0
    %68 = vmatpush.msra.mxu0 0.0
    %69 = vmatpush.msra.mxu0 0.0
    %70 = vmatpush.msra.mxu0 0.0
    %71 = vmatpush.msra.mxu0 0.0
    %72 = vmatpush.msra.mxu0 0.0
    %73 = vmatpush.msra.mxu0 0.0
    %74 = vmatpush.msra.mxu0 0.0
    %75 = vmatpush.msra.mxu0 0.0
    %76 = vmatpush.msra.mxu0 0.0
    %77 = vmatpush.msra.mxu0 0.0
    %78 = vmatpush.msra.mxu0 %v59
    %79 = vmatmul.f32.gmra.mxu0 %v32
    %v80 = vpop.f32.mrf.mxu0
    %v81 = vadd.f32 0.0, %v80
    %82 = vmatmul.f32.gmra.mxu0 %v35
    %v83 = vpop.f32.mrf.mxu0
    %v84 = vadd.f32 0.0, %v83
    %85 = vmatmul.f32.gmra.mxu0 %v38
    %v86 = vpop.f32.mrf.mxu0
    %v87 = vadd.f32 0.0, %v86
    %88 = vmatmul.f32.gmra.mxu0 %v41
    %v89 = vpop.f32.mrf.mxu0
    %v90 = vadd.f32 0.0, %v89
    %91 = vmatmul.f32.gmra.mxu0 %v44
    %v92 = vpop.f32.mrf.mxu0
    %v93 = vadd.f32 0.0, %v92
    %94 = vmatmul.f32.gmra.mxu0 %v47
    %v95 = vpop.f32.mrf.mxu0
    %v96 = vadd.f32 0.0, %v95
    %97 = vmatmul.f32.gmra.mxu0 %v50
    %v98 = vpop.f32.mrf.mxu0
    %v99 = vadd.f32 0.0, %v98
    %100 = vmatmul.f32.gmra.mxu0 %v53
    %v101 = vpop.f32.mrf.mxu0
    %v102 = vadd.f32 0.0, %v101
    %103 = vmatmul.f32.gmra.mxu0 %v56
    %v104 = vpop.f32.mrf.mxu0
    %v105 = vadd.f32 0.0, %v104
    %106 = vdwg.mxu0
    %107 = vmatpush.msra.mxu0 0.0
    %108 = vmatpush.msra.mxu0 0.0
    %109 = vmatpush.msra.mxu0 0.0
    %110 = vmatpush.msra.mxu0 0.0
    %111 = vmatpush.msra.mxu0 0.0
    %112 = vmatpush.msra.mxu0 0.0
    %113 = vmatpush.msra.mxu0 0.0
    %114 = vmatpush.msra.mxu0 0.0
    %115 = vmatpush.msra.mxu0 0.0
    %116 = vmatpush.msra.mxu0 0.0
    %117 = vmatpush.msra.mxu0 0.0
    %118 = vmatpush.msra.mxu0 0.0
    %119 = vmatpush.msra.mxu0 0.0
    %120 = vmatpush.msra.mxu0 0.0
    %121 = vmatpush.msra.mxu0 0.0
    %122 = vmatpush.msra.mxu0 %v61
    %123 = vmatmul.f32.gmra.mxu0 %v32
    %v124 = vpop.f32.mrf.mxu0
    %v125 = vadd.f32 0.0, %v124
    %126 = vmatmul.f32.gmra.mxu0 %v35
    %v127 = vpop.f32.mrf.mxu0
    %v128 = vadd.f32 0.0, %v127
    %129 = vmatmul.f32.gmra.mxu0 %v38
    %v130 = vpop.f32.mrf.mxu0
    %v131 = vadd.f32 0.0, %v130
    %132 = vmatmul.f32.gmra.mxu0 %v41
    %v133 = vpop.f32.mrf.mxu0
    %v134 = vadd.f32 0.0, %v133
    %135 = vmatmul.f32.gmra.mxu0 %v44
    %v136 = vpop.f32.mrf.mxu0
    %v137 = vadd.f32 0.0, %v136
    %138 = vmatmul.f32.gmra.mxu0 %v47
    %v139 = vpop.f32.mrf.mxu0
    %v140 = vadd.f32 0.0, %v139
    %141 = vmatmul.f32.gmra.mxu0 %v50
    %v142 = vpop.f32.mrf.mxu0
    %v143 = vadd.f32 0.0, %v142
    %144 = vmatmul.f32.gmra.mxu0 %v53
    %v145 = vpop.f32.mrf.mxu0
    %v146 = vadd.f32 0.0, %v145
    %147 = vmatmul.f32.gmra.mxu0 %v56
    %v148 = vpop.f32.mrf.mxu0
    %v149 = vadd.f32 0.0, %v148
    %150 = vdwg.mxu0
    %151 = vrot.lane.b32.xlu0 %v84, 127
    %v152 = vpop.permute.xlu0 %151
    %153 = vrot.lane.b32.xlu0 %v128, 127
    %v154 = vpop.permute.xlu0 %153
    %v155 = vlaneseq
    %v156 = vand.u32 %v155, 127
    %vm157 = vcmp.lt.s32.totalorder %v156, 127
    %v158 = vsel %vm157, %v152, %v154
    %v159 = vsel %vm157, %v154, %v152
    %v160 = vadd.f32 %v81, %v158
    %v161 = vadd.f32 %v125, %v159
    %162 = vrot.lane.b32.xlu0 %v87, 126
    %v163 = vpop.permute.xlu0 %162
    %164 = vrot.lane.b32.xlu0 %v131, 126
    %v165 = vpop.permute.xlu0 %164
    %vm166 = vcmp.lt.s32.totalorder %v156, 126
    %v167 = vsel %vm166, %v163, %v165
    %v168 = vsel %vm166, %v165, %v163
    %v169 = vadd.f32 %v160, %v167
    %v170 = vadd.f32 %v161, %v168
    %171 = vrot.lane.b32.xlu0 %v90, 112
    %v172 = vpop.permute.xlu0 %171
    %173 = vrot.lane.b32.xlu0 %v134, 112
    %v174 = vpop.permute.xlu0 %173
    %vm175 = vcmp.lt.s32.totalorder %v156, 112
    %v176 = vsel %vm175, %v172, %v174
    %v177 = vsel %vm175, %v174, %v172
    %v178 = vadd.f32 %v169, %v176
    %v179 = vadd.f32 %v170, %v177
    %180 = vrot.lane.b32.xlu0 %v93, 111
    %v181 = vpop.permute.xlu0 %180
    %182 = vrot.lane.b32.xlu0 %v137, 111
    %v183 = vpop.permute.xlu0 %182
    %vm184 = vcmp.lt.s32.totalorder %v156, 111
    %v185 = vsel %vm184, %v181, %v183
    %v186 = vsel %vm184, %v183, %v181
    %v187 = vadd.f32 %v178, %v185
    %v188 = vadd.f32 %v179, %v186
    %189 = vrot.lane.b32.xlu0 %v96, 110
    %v190 = vpop.permute.xlu0 %189
    %191 = vrot.lane.b32.xlu0 %v140, 110
    %v192 = vpop.permute.xlu0 %191
    %vm193 = vcmp.lt.s32.totalorder %v156, 110
    %v194 = vsel %vm193, %v190, %v192
    %v195 = vsel %vm193, %v192, %v190
    %v196 = vadd.f32 %v187, %v194
    %v197 = vadd.f32 %v188, %v195
    %198 = vrot.lane.b32.xlu0 %v99, 96
    %v199 = vpop.permute.xlu0 %198
    %200 = vrot.lane.b32.xlu0 %v143, 96
    %v201 = vpop.permute.xlu0 %200
    %vm202 = vcmp.lt.s32.totalorder %v156, 96
    %v203 = vsel %vm202, %v199, %v201
    %v204 = vsel %vm202, %v201, %v199
    %v205 = vadd.f32 %v196, %v203
    %v206 = vadd.f32 %v197, %v204
    %207 = vrot.lane.b32.xlu0 %v102, 95
    %v208 = vpop.permute.xlu0 %207
    %209 = vrot.lane.b32.xlu0 %v146, 95
    %v210 = vpop.permute.xlu0 %209
    %vm211 = vcmp.lt.s32.totalorder %v156, 95
    %v212 = vsel %vm211, %v208, %v210
    %v213 = vsel %vm211, %v210, %v208
    %v214 = vadd.f32 %v205, %v212
    %v215 = vadd.f32 %v206, %v213
    %216 = vrot.lane.b32.xlu0 %v105, 94
    %v217 = vpop.permute.xlu0 %216
    %218 = vrot.lane.b32.xlu0 %v149, 94
    %v219 = vpop.permute.xlu0 %218
    %vm220 = vcmp.lt.s32.totalorder %v156, 94
    %v221 = vsel %vm220, %v217, %v219
    %v222 = vsel %vm220, %v219, %v217
    %v223 = vadd.f32 %v214, %v221
    %v224 = vadd.f32 %v215, %v222
    %226 = vset.pattern.permute.xlu0 0
    %227 = vperm.xlu0 %226, %v24
    %v228 = vpop.permute.xlu0 %227
    %v230 = vadd.f32 %v223, %v228
    %v231 = vadd.f32 %v224, %v228
    %v232 = vmax.f32 %v230, 0.0
    %v233 = vmax.f32 %v231, 0.0
    %234 = vset.pattern.permute.xlu0 1
    %235 = vperm.xlu0 %234, %v24
    %v236 = vpop.permute.xlu0 %235
    %v238 = vmul.f32 %v232, %v236
    %v239 = vmul.f32 %v233, %v236
    %240 = vset.pattern.permute.xlu0 2
    %241 = vperm.xlu0 %240, %v24
    %v242 = vpop.permute.xlu0 %241
    %v244 = vadd.f32 %v238, %v242
    %v245 = vadd.f32 %v239, %v242
    %246 = vst [vmem:[#allocation2] sm:$0xff] %v244
    %247 = vst [vmem:[#allocation2 + $0x8] sm:$0xff] %v245
    %s248 = scalar_lea.vmem %s0, 8
    %v249 = vld [vmem:[%s248] sm:$0xff]
    %251 = vst [vmem:[#allocation1] ss:$2 sm:$0xff] %v249
    %v252 = vld.sshfl [vmem:[#allocation1] sm:$0xff pattern:$0x75316420]
    %v253 = vld.sshfl [vmem:[#allocation1 + $0x8] sm:$0xff pattern:$0x75316420]
    %v254 = vsel %vm58, %v252, 0
    %v256 = vsel %vm58, %v253, 0
    %258 = vmatpush.msra.mxu0 0.0
    %259 = vmatpush.msra.mxu0 0.0
    %260 = vmatpush.msra.mxu0 0.0
    %261 = vmatpush.msra.mxu0 0.0
    %262 = vmatpush.msra.mxu0 0.0
    %263 = vmatpush.msra.mxu0 0.0
    %264 = vmatpush.msra.mxu0 0.0
    %265 = vmatpush.msra.mxu0 0.0
    %266 = vmatpush.msra.mxu0 0.0
    %267 = vmatpush.msra.mxu0 0.0
    %268 = vmatpush.msra.mxu0 0.0
    %269 = vmatpush.msra.mxu0 0.0
    %270 = vmatpush.msra.mxu0 0.0
    %271 = vmatpush.msra.mxu0 0.0
    %272 = vmatpush.msra.mxu0 0.0
    %273 = vmatpush.msra.mxu0 %v254
    %274 = vmatmul.f32.gmra.mxu0 %v32
    %v275 = vpop.f32.mrf.mxu0
    %v276 = vadd.f32 0.0, %v275
    %277 = vmatmul.f32.gmra.mxu0 %v35
    %v278 = vpop.f32.mrf.mxu0
    %v279 = vadd.f32 0.0, %v278
    %280 = vmatmul.f32.gmra.mxu0 %v38
    %v281 = vpop.f32.mrf.mxu0
    %v282 = vadd.f32 0.0, %v281
    %283 = vmatmul.f32.gmra.mxu0 %v41
    %v284 = vpop.f32.mrf.mxu0
    %v285 = vadd.f32 0.0, %v284
    %286 = vmatmul.f32.gmra.mxu0 %v44
    %v287 = vpop.f32.mrf.mxu0
    %v288 = vadd.f32 0.0, %v287
    %289 = vmatmul.f32.gmra.mxu0 %v47
    %v290 = vpop.f32.mrf.mxu0
    %v291 = vadd.f32 0.0, %v290
    %292 = vmatmul.f32.gmra.mxu0 %v50
    %v293 = vpop.f32.mrf.mxu0
    %v294 = vadd.f32 0.0, %v293
    %295 = vmatmul.f32.gmra.mxu0 %v53
    %v296 = vpop.f32.mrf.mxu0
    %v297 = vadd.f32 0.0, %v296
    %298 = vmatmul.f32.gmra.mxu0 %v56
    %v299 = vpop.f32.mrf.mxu0
    %v300 = vadd.f32 0.0, %v299
    %301 = vdwg.mxu0
    %302 = vmatpush.msra.mxu0 0.0
    %303 = vmatpush.msra.mxu0 0.0
    %304 = vmatpush.msra.mxu0 0.0
    %305 = vmatpush.msra.mxu0 0.0
    %306 = vmatpush.msra.mxu0 0.0
    %307 = vmatpush.msra.mxu0 0.0
    %308 = vmatpush.msra.mxu0 0.0
    %309 = vmatpush.msra.mxu0 0.0
    %310 = vmatpush.msra.mxu0 0.0
    %311 = vmatpush.msra.mxu0 0.0
    %312 = vmatpush.msra.mxu0 0.0
    %313 = vmatpush.msra.mxu0 0.0
    %314 = vmatpush.msra.mxu0 0.0
    %315 = vmatpush.msra.mxu0 0.0
    %316 = vmatpush.msra.mxu0 0.0
    %317 = vmatpush.msra.mxu0 %v256
    %318 = vmatmul.f32.gmra.mxu0 %v32
    %v319 = vpop.f32.mrf.mxu0
    %v320 = vadd.f32 0.0, %v319
    %321 = vmatmul.f32.gmra.mxu0 %v35
    %v322 = vpop.f32.mrf.mxu0
    %v323 = vadd.f32 0.0, %v322
    %324 = vmatmul.f32.gmra.mxu0 %v38
    %v325 = vpop.f32.mrf.mxu0
    %v326 = vadd.f32 0.0, %v325
    %327 = vmatmul.f32.gmra.mxu0 %v41
    %v328 = vpop.f32.mrf.mxu0
    %v329 = vadd.f32 0.0, %v328
    %330 = vmatmul.f32.gmra.mxu0 %v44
    %v331 = vpop.f32.mrf.mxu0
    %v332 = vadd.f32 0.0, %v331
    %333 = vmatmul.f32.gmra.mxu0 %v47
    %v334 = vpop.f32.mrf.mxu0
    %v335 = vadd.f32 0.0, %v334
    %336 = vmatmul.f32.gmra.mxu0 %v50
    %v337 = vpop.f32.mrf.mxu0
    %v338 = vadd.f32 0.0, %v337
    %339 = vmatmul.f32.gmra.mxu0 %v53
    %v340 = vpop.f32.mrf.mxu0
    %v341 = vadd.f32 0.0, %v340
    %342 = vmatmul.f32.gmra.mxu0 %v56
    %v343 = vpop.f32.mrf.mxu0
    %v344 = vadd.f32 0.0, %v343
    %345 = vdwg.mxu0
    %346 = vrot.lane.b32.xlu0 %v279, 127
    %v347 = vpop.permute.xlu0 %346
    %348 = vrot.lane.b32.xlu0 %v323, 127
    %v349 = vpop.permute.xlu0 %348
    %v350 = vsel %vm157, %v347, %v349
    %v351 = vsel %vm157, %v349, %v347
    %v352 = vadd.f32 %v276, %v350
    %v353 = vadd.f32 %v320, %v351
    %354 = vrot.lane.b32.xlu0 %v282, 126
    %v355 = vpop.permute.xlu0 %354
    %356 = vrot.lane.b32.xlu0 %v326, 126
    %v357 = vpop.permute.xlu0 %356
    %v358 = vsel %vm166, %v355, %v357
    %v359 = vsel %vm166, %v357, %v355
    %v360 = vadd.f32 %v352, %v358
    %v361 = vadd.f32 %v353, %v359
    %362 = vrot.lane.b32.xlu0 %v285, 112
    %v363 = vpop.permute.xlu0 %362
    %364 = vrot.lane.b32.xlu0 %v329, 112
    %v365 = vpop.permute.xlu0 %364
    %v366 = vsel %vm175, %v363, %v365
    %v367 = vsel %vm175, %v365, %v363
    %v368 = vadd.f32 %v360, %v366
    %v369 = vadd.f32 %v361, %v367
    %370 = vrot.lane.b32.xlu0 %v288, 111
    %v371 = vpop.permute.xlu0 %370
    %372 = vrot.lane.b32.xlu0 %v332, 111
    %v373 = vpop.permute.xlu0 %372
    %v374 = vsel %vm184, %v371, %v373
    %v375 = vsel %vm184, %v373, %v371
    %v376 = vadd.f32 %v368, %v374
    %v377 = vadd.f32 %v369, %v375
    %378 = vrot.lane.b32.xlu0 %v291, 110
    %v379 = vpop.permute.xlu0 %378
    %380 = vrot.lane.b32.xlu0 %v335, 110
    %v381 = vpop.permute.xlu0 %380
    %v382 = vsel %vm193, %v379, %v381
    %v383 = vsel %vm193, %v381, %v379
    %v384 = vadd.f32 %v376, %v382
    %v385 = vadd.f32 %v377, %v383
    %386 = vrot.lane.b32.xlu0 %v294, 96
    %v387 = vpop.permute.xlu0 %386
    %388 = vrot.lane.b32.xlu0 %v338, 96
    %v389 = vpop.permute.xlu0 %388
    %v390 = vsel %vm202, %v387, %v389
    %v391 = vsel %vm202, %v389, %v387
    %v392 = vadd.f32 %v384, %v390
    %v393 = vadd.f32 %v385, %v391
    %394 = vrot.lane.b32.xlu0 %v297, 95
    %v395 = vpop.permute.xlu0 %394
    %396 = vrot.lane.b32.xlu0 %v341, 95
    %v397 = vpop.permute.xlu0 %396
    %v398 = vsel %vm211, %v395, %v397
    %v399 = vsel %vm211, %v397, %v395
    %v400 = vadd.f32 %v392, %v398
    %v401 = vadd.f32 %v393, %v399
    %402 = vrot.lane.b32.xlu0 %v300, 94
    %v403 = vpop.permute.xlu0 %402
    %404 = vrot.lane.b32.xlu0 %v344, 94
    %v405 = vpop.permute.xlu0 %404
    %v406 = vsel %vm220, %v403, %v405
    %v407 = vsel %vm220, %v405, %v403
    %v408 = vadd.f32 %v400, %v406
    %v409 = vadd.f32 %v401, %v407
    %v410 = vadd.f32 %v408, %v228
    %v411 = vadd.f32 %v409, %v228
    %v412 = vmax.f32 %v410, 0.0
    %v413 = vmax.f32 %v411, 0.0
    %v414 = vmul.f32 %v412, %v236
    %v415 = vmul.f32 %v413, %v236
    %v416 = vadd.f32 %v414, %v242
    %v417 = vadd.f32 %v415, %v242
    %s418 = scalar_lea.vmem [#allocation2], 16
    %419 = vst [vmem:[%s418] sm:$0xff] %v416
    %420 = vst [vmem:[%s418 + $0x8] sm:$0xff] %v417
    // Predicated region
    $region14: #{tpu_custom_call.1} parent=1 // pred_check
      _
    $region15: #{tpu_custom_call.1} parent=1 // pred_check_branch
      %422 = sbr.rel (0) target = $region17
    $region16: #{tpu_custom_call.1} parent=1 // pred_region
      %424 = vsyncadd [#allocation3], 0
      %s425 = sshll.u32 [#allocation2], 4
      %s426 = int_to_ptr.vmem [resolvable:$true] %s425
      %s427 = sshll.u32 %s3, 4
      %s428 = int_to_ptr.hbm [resolvable:$true] %s427
      %433 = dma.vmem_to_hbm [thread:$0]  %s426, 512, %s428, [#allocation3], 256, 256, 16
    $region17: #{tpu_custom_call.1} parent=1 // pred_fallthru
      _
    // Predicated region
    $region18: #{tpu_custom_call.1} parent=1 // pred_check
      _
    $region19: #{tpu_custom_call.1} parent=1 // pred_check_branch
      %435 = sbr.rel (0) target = $region21
    $region20: #{tpu_custom_call.1} parent=1 // pred_region
      %437 = dma.done [#allocation3], 512
    $region21: #{tpu_custom_call.1} parent=1 // pred_fallthru
      _
    %438 = vsyncpa [#allocation3], 1

</llo_original>
